<compile_context>
chip_gen: v6e
topology: v6e:2x2x1
jax: 0.10.0
libtpu: 0.0.40
codegen_flags: <defaults>
</compile_context>

<pallas_src>
import jax
import jax.numpy as jnp
from jax.experimental import pallas as pl
from jax.experimental.pallas import tpu as pltpu


# ------------------------------ Pallas kernel --------------------------------
def _make_kernel(*, BT, S, H, eps):
    """Builds the fused gather + add-pos + LayerNorm kernel.

    Kernel args (PrefetchScalarGridSpec ordering):
      ids_ref   : SMEM  [B, S] int32   (scalar-prefetched token ids)
      pe_ref    : VMEM  [S, H]         (position embeddings, shared)
      gamma_ref : VMEM  [1, H]
      beta_ref  : VMEM  [1, H]
      we_hbm    : HBM   [V, H]         (word-embedding table, memory_space=ANY)
      out_ref   : VMEM  [BT, S, H]
      gbuf      : VMEM  [2, S, H]      (gather double buffer, one batch row each)
      sems      : DMA semaphores (2,)
    """

    def kernel(ids_ref, pe_ref, gamma_ref, beta_ref, we_hbm, out_ref, gbuf, sems):
        t = pl.program_id(0)

        def start_gather(local_b, slot):
            # Issue S row-DMAs: word_emb[ids[t*BT + local_b, s]] -> gbuf[slot, s]
            @pl.loop(0, S)
            def _(s):
                row = ids_ref[t * BT + local_b, s]
                pltpu.make_async_copy(
                    we_hbm.at[row], gbuf.at[slot, s], sems.at[slot]
                ).start()

        def wait_gather(slot):
            # Wait for the S row-DMAs issued into this slot (same-shape descriptors).
            @pl.loop(0, S)
            def _(s):
                pltpu.make_async_copy(
                    we_hbm.at[0], gbuf.at[slot, 0], sems.at[slot]
                ).wait()

        # Prime the pipeline with the first batch row of this tile.
        start_gather(0, 0)

        @pl.loop(0, BT)
        def _(local_b):
            slot = local_b % 2
            wait_gather(slot)

            # Prefetch the next batch row's embeddings while we normalize this one.
            @pl.when(local_b + 1 < BT)
            def _():
                start_gather(local_b + 1, 1 - slot)

            x = gbuf[slot].astype(jnp.float32) + pe_ref[...].astype(jnp.float32)

            # Single-pass LayerNorm statistics: var = E[x^2] - mean^2.
            mean = jnp.mean(x, axis=-1, keepdims=True)
            mean_sq = jnp.mean(x * x, axis=-1, keepdims=True)
            var = jnp.maximum(mean_sq - mean * mean, 0.0)
            y = (x - mean) * jax.lax.rsqrt(var + eps)
            y = y * gamma_ref[...].astype(jnp.float32) + beta_ref[...].astype(jnp.float32)

            out_ref[local_b] = y.astype(out_ref.dtype)

        # TODO(synk): dropout is identity in eval mode; training-mode dropout
        # (pltpu.prng_seed + stateful_bernoulli) intentionally omitted.

    return kernel


def _pick_batch_tile(B, S, H, itemsize, budget_bytes=2 * 1024 * 1024):
    """Largest divisor of B whose (BT, S, H) output buffer fits the budget."""
    best = 1
    for bt in range(1, B + 1):
        if B % bt == 0 and bt * S * H * itemsize <= budget_bytes:
            best = bt
    return best


# ------------------------------ wrapper ---------------------------------------
def bert_embeddings(input_ids, params, *, eps=1e-12, past_key_values_length=0,
                    out_dtype=None):
    """Forward pass of BertEmbeddings (eval mode).

    input_ids: int32 [B, S]
    params: dict with word_emb [V,H], pos_emb [P,H], gamma [H], beta [H]
    returns [B, S, H] in out_dtype (default: word_emb dtype; pass jnp.bfloat16
    to halve HBM writeback if downstream consumes bf16).
    """
    B, S = input_ids.shape
    word_emb = params["word_emb"]
    V, H = word_emb.shape
    if out_dtype is None:
        out_dtype = word_emb.dtype

    # Glue: position-embedding slice (tiny [S,H], shared across batch).
    position_ids = jnp.arange(past_key_values_length,
                              S + past_key_values_length, dtype=jnp.int32)
    pos_embeds = jnp.take(params["pos_emb"], position_ids, axis=0)       # [S, H]

    gamma = params["gamma"].reshape(1, H)
    beta = params["beta"].reshape(1, H)

    itemsize = jnp.dtype(out_dtype).itemsize
    BT = _pick_batch_tile(B, S, H, itemsize)
    n_tiles = B // BT

    kernel = _make_kernel(BT=BT, S=S, H=H, eps=float(eps))

    grid_spec = pltpu.PrefetchScalarGridSpec(
        num_scalar_prefetch=1,                       # input_ids -> SMEM
        grid=(n_tiles,),
        in_specs=[
            pl.BlockSpec((S, H), lambda t, ids: (0, 0)),   # position embeds (resident)
            pl.BlockSpec((1, H), lambda t, ids: (0, 0)),   # gamma (resident)
            pl.BlockSpec((1, H), lambda t, ids: (0, 0)),   # beta  (resident)
            pl.BlockSpec(memory_space=pl.ANY),             # word-emb table stays in HBM
        ],
        out_specs=pl.BlockSpec((BT, S, H), lambda t, ids: (t, 0, 0)),
        scratch_shapes=[
            pltpu.VMEM((2, S, H), word_emb.dtype),         # gather double buffer
            pltpu.SemaphoreType.DMA((2,)),
        ],
    )

    return pl.pallas_call(
        kernel,
        out_shape=jax.ShapeDtypeStruct((B, S, H), out_dtype),
        grid_spec=grid_spec,
        compiler_params=pltpu.CompilerParams(
            dimension_semantics=("parallel",),             # megacore-safe: per-step-local DMA state
            vmem_limit_bytes=32 * 1024 * 1024,             # fits v5e/v6e/v7x scoped VMEM
        ),
    )(input_ids.astype(jnp.int32), pos_embeds, gamma, beta, word_emb)


# --------------------------- reference (pure JAX) -----------------------------
def bert_embeddings_ref(input_ids, params, *, eps=1e-12, past_key_values_length=0):
    x = jnp.take(params["word_emb"], input_ids, axis=0)
    pos_ids = jnp.arange(past_key_values_length,
                         input_ids.shape[1] + past_key_values_length, dtype=jnp.int32)
    pos = jnp.take(params["pos_emb"], pos_ids, axis=0)
    x = x + pos[None, :, :]
    mean = jnp.mean(x, axis=-1, keepdims=True)
    var = jnp.mean((x - mean) ** 2, axis=-1, keepdims=True)
    y = (x - mean) / jnp.sqrt(var + eps)
    return y * params["gamma"] + params["beta"]


# ----------------------------------- main --------------------------------------
if __name__ == "__main__":
    # Small synthetic config (mirrors the BertConfig fields used by the module).
    vocab_size = 64
    hidden_size = 128           # lane-dense hidden (multiple of 128)
    max_position_embeddings = 16
    num_extra_tokens = 2
    pad_token_id = 0
    layer_norm_eps = 1e-12

    B, S = 2, 8

    key = jax.random.PRNGKey(0)
    k_we, k_pe, k_g, k_b, k_ids = jax.random.split(key, 5)

    word_emb = 0.02 * jax.random.normal(k_we, (vocab_size, hidden_size), jnp.float32)
    # nn.Embedding(padding_idx=pad_token_id) zeroes the pad row at init.
    word_emb = word_emb.at[pad_token_id].set(0.0)
    pos_emb = 0.02 * jax.random.normal(
        k_pe, (max_position_embeddings + num_extra_tokens, hidden_size), jnp.float32)
    gamma = 1.0 + 0.1 * jax.random.normal(k_g, (hidden_size,), jnp.float32)
    beta = 0.1 * jax.random.normal(k_b, (hidden_size,), jnp.float32)

    params = dict(word_emb=word_emb, pos_emb=pos_emb, gamma=gamma, beta=beta)

    input_ids = jax.random.randint(k_ids, (B, S), 0, vocab_size, dtype=jnp.int32)

    out = bert_embeddings(input_ids, params, eps=layer_norm_eps)
    out = jax.block_until_ready(out)

    ref = bert_embeddings_ref(input_ids, params, eps=layer_norm_eps)
    assert out.shape == (B, S, hidden_size)
    assert jnp.allclose(out, ref, atol=1e-5, rtol=1e-5), "mismatch vs reference"

    print("KERNEL_OK")
</pallas_src>

<mosaic_0001>
module attributes {stable_mosaic.version = 11 : i64} {
  func.func @kernel(%arg0: i32, %arg1: memref<2x8xi32, #tpu.memory_space<smem>>, %arg2: memref<8x128xf32, #tpu.memory_space<vmem>>, %arg3: memref<1x128xf32, #tpu.memory_space<vmem>>, %arg4: memref<1x128xf32, #tpu.memory_space<vmem>>, %arg5: memref<64x128xf32, #tpu.memory_space<any>>, %arg6: memref<2x8x128xf32, #tpu.memory_space<vmem>>, %arg7: memref<2x8x128xf32, #tpu.memory_space<vmem>>, %arg8: memref<2x!tpu.dma_semaphore, #tpu.memory_space<semaphore_mem>>) attributes {dimension_semantics = [#tpu.dimension_semantics<parallel>], iteration_bounds = array<i64: 1>, scalar_prefetch = 1 : i64, scratch_operands = 2 : i64, tpu.core_type = #tpu.core_type<tc>, window_params = [{pipeline_mode = #tpu.pipeline_mode<synchronous>, transform_indices = @transform_0, window_bounds = array<i64: 8, 128>}, {pipeline_mode = #tpu.pipeline_mode<synchronous>, transform_indices = @transform_1, window_bounds = array<i64: 1, 128>}, {pipeline_mode = #tpu.pipeline_mode<synchronous>, transform_indices = @transform_2, window_bounds = array<i64: 1, 128>}, {}, {transform_indices = @transform_4, window_bounds = array<i64: 2, 8, 128>}]} {
    %c0_i32 = arith.constant 0 : i32
    %c8_i32 = arith.constant 8 : i32
    %0 = arith.addi %c0_i32, %c8_i32 : i32
    %c1_i32 = arith.constant 1 : i32
    scf.for %arg9 = %c0_i32 to %0 step %c1_i32  : i32 {
      %c1_i32_4 = arith.constant 1 : i32
      %2 = arith.muli %arg9, %c1_i32_4 : i32
      %c0_i32_5 = arith.constant 0 : i32
      %3 = arith.addi %c0_i32_5, %2 : i32
      %c2_i32_6 = arith.constant 2 : i32
      %4 = arith.muli %arg0, %c2_i32_6 : i32
      %c0_i32_7 = arith.constant 0 : i32
      %5 = arith.addi %4, %c0_i32_7 : i32
      %6 = arith.index_cast %5 : i32 to index
      %7 = arith.index_cast %3 : i32 to index
      %8 = memref.load %arg1[%6, %7] : memref<2x8xi32, #tpu.memory_space<smem>>
      %c0_i32_8 = arith.constant 0 : i32
      %c0_i32_9 = arith.constant 0 : i32
      %c0_i32_10 = arith.constant 0 : i32
      %9 = tpu.memref_slice %arg5[%8, %c0_i32_10] : memref<64x128xf32, #tpu.memory_space<any>> -> memref<1x128xf32, #tpu.memory_space<any>>
      %10 = tpu.memref_squeeze %9 : memref<1x128xf32, #tpu.memory_space<any>> -> memref<128xf32, #tpu.memory_space<any>>
      %c0_i32_11 = arith.constant 0 : i32
      %11 = tpu.memref_slice %arg7[%c0_i32_8, %3, %c0_i32_11] : memref<2x8x128xf32, #tpu.memory_space<vmem>> -> memref<1x1x128xf32, #tpu.memory_space<vmem>>
      %12 = tpu.memref_squeeze %11 : memref<1x1x128xf32, #tpu.memory_space<vmem>> -> memref<128xf32, #tpu.memory_space<vmem>>
      %13 = tpu.memref_slice %arg8[%c0_i32_9] : memref<2x!tpu.dma_semaphore, #tpu.memory_space<semaphore_mem>> -> memref<1x!tpu.dma_semaphore, #tpu.memory_space<semaphore_mem>>
      %14 = tpu.memref_squeeze %13 : memref<1x!tpu.dma_semaphore, #tpu.memory_space<semaphore_mem>> -> memref<!tpu.dma_semaphore, #tpu.memory_space<semaphore_mem>>
      tpu.enqueue_dma source(%10 : memref<128xf32, #tpu.memory_space<any>>) target(%12 : memref<128xf32, #tpu.memory_space<vmem>>) target_semaphore(%14 : memref<!tpu.dma_semaphore, #tpu.memory_space<semaphore_mem>>)
    }
    %c8_i32_0 = arith.constant 8 : i32
    %c0_i32_1 = arith.constant 0 : i32
    %c2_i32 = arith.constant 2 : i32
    %1 = arith.addi %c0_i32_1, %c2_i32 : i32
    %c1_i32_2 = arith.constant 1 : i32
    scf.for %arg9 = %c0_i32_1 to %1 step %c1_i32_2  : i32 {
      %c1_i32_4 = arith.constant 1 : i32
      %2 = arith.muli %arg9, %c1_i32_4 : i32
      %c0_i32_5 = arith.constant 0 : i32
      %3 = arith.addi %c0_i32_5, %2 : i32
      %c2_i32_6 = arith.constant 2 : i32
      %c0_i32_7 = arith.constant 0 : i32
      %4 = arith.cmpi eq, %c2_i32_6, %c0_i32_7 : i32
      %c1_i32_8 = arith.constant 1 : i32
      %5 = arith.select %4, %c1_i32_8, %c2_i32_6 : i32
      %6 = arith.remsi %3, %5 : i32
      %c0_i32_9 = arith.constant 0 : i32
      %7 = arith.cmpi ne, %6, %c0_i32_9 : i32
      %c0_i32_10 = arith.constant 0 : i32
      %8 = arith.cmpi slt, %6, %c0_i32_10 : i32
      %c0_i32_11 = arith.constant 0 : i32
      %9 = arith.cmpi slt, %5, %c0_i32_11 : i32
      %10 = arith.xori %8, %9 : i1
      %11 = arith.andi %10, %7 : i1
      %12 = arith.addi %6, %5 : i32
      %13 = arith.select %11, %12, %6 : i32
      %c0_i32_12 = arith.constant 0 : i32
      %c8_i32_13 = arith.constant 8 : i32
      %14 = arith.addi %c0_i32_12, %c8_i32_13 : i32
      %c1_i32_14 = arith.constant 1 : i32
      scf.for %arg10 = %c0_i32_12 to %14 step %c1_i32_14  : i32 {
        %c0_i32_32 = arith.constant 0 : i32
        %c0_i32_33 = arith.constant 0 : i32
        %c0_i32_34 = arith.constant 0 : i32
        %54 = tpu.memref_slice %arg5[%c0_i32_32, %c0_i32_34] : memref<64x128xf32, #tpu.memory_space<any>> -> memref<1x128xf32, #tpu.memory_space<any>>
        %55 = tpu.memref_squeeze %54 : memref<1x128xf32, #tpu.memory_space<any>> -> memref<128xf32, #tpu.memory_space<any>>
        %c0_i32_35 = arith.constant 0 : i32
        %56 = tpu.memref_slice %arg7[%13, %c0_i32_33, %c0_i32_35] : memref<2x8x128xf32, #tpu.memory_space<vmem>> -> memref<1x1x128xf32, #tpu.memory_space<vmem>>
        %57 = tpu.memref_squeeze %56 : memref<1x1x128xf32, #tpu.memory_space<vmem>> -> memref<128xf32, #tpu.memory_space<vmem>>
        %58 = tpu.memref_slice %arg8[%13] : memref<2x!tpu.dma_semaphore, #tpu.memory_space<semaphore_mem>> -> memref<1x!tpu.dma_semaphore, #tpu.memory_space<semaphore_mem>>
        %59 = tpu.memref_squeeze %58 : memref<1x!tpu.dma_semaphore, #tpu.memory_space<semaphore_mem>> -> memref<!tpu.dma_semaphore, #tpu.memory_space<semaphore_mem>>
        tpu.wait_dma2 semaphore(%59 : memref<!tpu.dma_semaphore, #tpu.memory_space<semaphore_mem>>) src(%55 : memref<128xf32, #tpu.memory_space<any>>) dst(%57 : memref<128xf32, #tpu.memory_space<vmem>>)
      }
      %c1_i32_15 = arith.constant 1 : i32
      %15 = arith.addi %3, %c1_i32_15 : i32
      %c2_i32_16 = arith.constant 2 : i32
      %16 = arith.cmpi slt, %15, %c2_i32_16 : i32
      %17 = arith.extui %16 : i1 to i32
      %c0_i32_17 = arith.constant 0 : i32
      %18 = arith.cmpi ne, %17, %c0_i32_17 : i32
      scf.if %18 {
        %c1_i32_32 = arith.constant 1 : i32
        %54 = arith.addi %3, %c1_i32_32 : i32
        %c1_i32_33 = arith.constant 1 : i32
        %55 = arith.subi %c1_i32_33, %13 : i32
        %c0_i32_34 = arith.constant 0 : i32
        %c8_i32_35 = arith.constant 8 : i32
        %56 = arith.addi %c0_i32_34, %c8_i32_35 : i32
        %c1_i32_36 = arith.constant 1 : i32
        scf.for %arg10 = %c0_i32_34 to %56 step %c1_i32_36  : i32 {
          %c1_i32_38 = arith.constant 1 : i32
          %57 = arith.muli %arg10, %c1_i32_38 : i32
          %c0_i32_39 = arith.constant 0 : i32
          %58 = arith.addi %c0_i32_39, %57 : i32
          %c2_i32_40 = arith.constant 2 : i32
          %59 = arith.muli %arg0, %c2_i32_40 : i32
          %60 = arith.addi %59, %54 : i32
          %61 = arith.index_cast %60 : i32 to index
          %62 = arith.index_cast %58 : i32 to index
          %63 = memref.load %arg1[%61, %62] : memref<2x8xi32, #tpu.memory_space<smem>>
          %c0_i32_41 = arith.constant 0 : i32
          %64 = tpu.memref_slice %arg5[%63, %c0_i32_41] : memref<64x128xf32, #tpu.memory_space<any>> -> memref<1x128xf32, #tpu.memory_space<any>>
          %65 = tpu.memref_squeeze %64 : memref<1x128xf32, #tpu.memory_space<any>> -> memref<128xf32, #tpu.memory_space<any>>
          %c0_i32_42 = arith.constant 0 : i32
          %66 = tpu.memref_slice %arg7[%55, %58, %c0_i32_42] : memref<2x8x128xf32, #tpu.memory_space<vmem>> -> memref<1x1x128xf32, #tpu.memory_space<vmem>>
          %67 = tpu.memref_squeeze %66 : memref<1x1x128xf32, #tpu.memory_space<vmem>> -> memref<128xf32, #tpu.memory_space<vmem>>
          %68 = tpu.memref_slice %arg8[%55] : memref<2x!tpu.dma_semaphore, #tpu.memory_space<semaphore_mem>> -> memref<1x!tpu.dma_semaphore, #tpu.memory_space<semaphore_mem>>
          %69 = tpu.memref_squeeze %68 : memref<1x!tpu.dma_semaphore, #tpu.memory_space<semaphore_mem>> -> memref<!tpu.dma_semaphore, #tpu.memory_space<semaphore_mem>>
          tpu.enqueue_dma source(%65 : memref<128xf32, #tpu.memory_space<any>>) target(%67 : memref<128xf32, #tpu.memory_space<vmem>>) target_semaphore(%69 : memref<!tpu.dma_semaphore, #tpu.memory_space<semaphore_mem>>)
        }
        %c8_i32_37 = arith.constant 8 : i32
      } else {
      }
      %19 = arith.index_cast %13 : i32 to index
      %c0 = arith.constant 0 : index
      %c0_18 = arith.constant 0 : index
      %20 = vector.load %arg7[%19, %c0, %c0_18] : memref<2x8x128xf32, #tpu.memory_space<vmem>>, vector<1x8x128xf32>
      %21 = vector.shape_cast %20 : vector<1x8x128xf32> to vector<8x128xf32>
      %c0_19 = arith.constant 0 : index
      %c0_20 = arith.constant 0 : index
      %22 = vector.load %arg2[%c0_19, %c0_20] : memref<8x128xf32, #tpu.memory_space<vmem>>, vector<8x128xf32>
      %23 = arith.addf %21, %22 : vector<8x128xf32>
      %cst = arith.constant dense<0.000000e+00> : vector<8xf32>
      %24 = vector.multi_reduction <add>, %23, %cst [1] : vector<8x128xf32> to vector<8xf32>
      %25 = vector.shape_cast %24 : vector<8xf32> to vector<8x1xf32>
      %cst_21 = arith.constant 1.280000e+02 : f32
      %26 = vector.broadcast %cst_21 : f32 to vector<8x1xf32>
      %27 = arith.divf %25, %26 : vector<8x1xf32>
      %28 = arith.mulf %23, %23 : vector<8x128xf32>
      %cst_22 = arith.constant dense<0.000000e+00> : vector<8xf32>
      %29 = vector.multi_reduction <add>, %28, %cst_22 [1] : vector<8x128xf32> to vector<8xf32>
      %30 = vector.shape_cast %29 : vector<8xf32> to vector<8x1xf32>
      %cst_23 = arith.constant 1.280000e+02 : f32
      %31 = vector.broadcast %cst_23 : f32 to vector<8x1xf32>
      %32 = arith.divf %30, %31 : vector<8x1xf32>
      %33 = arith.mulf %27, %27 : vector<8x1xf32>
      %34 = arith.subf %32, %33 : vector<8x1xf32>
      %cst_24 = arith.constant 0.000000e+00 : f32
      %35 = vector.broadcast %cst_24 : f32 to vector<8x1xf32>
      %36 = arith.maximumf %34, %35 : vector<8x1xf32>
      %37 = vector.broadcast %27 : vector<8x1xf32> to vector<8x128xf32>
      %38 = arith.subf %23, %37 : vector<8x128xf32>
      %cst_25 = arith.constant 9.99999996E-13 : f32
      %39 = vector.broadcast %cst_25 : f32 to vector<8x1xf32>
      %40 = arith.addf %36, %39 : vector<8x1xf32>
      %41 = math.rsqrt %40 : vector<8x1xf32>
      %42 = vector.broadcast %41 : vector<8x1xf32> to vector<8x128xf32>
      %43 = arith.mulf %38, %42 : vector<8x128xf32>
      %c0_26 = arith.constant 0 : index
      %c0_27 = arith.constant 0 : index
      %44 = vector.load %arg3[%c0_26, %c0_27] : memref<1x128xf32, #tpu.memory_space<vmem>>, vector<1x128xf32>
      %45 = vector.broadcast %44 : vector<1x128xf32> to vector<8x128xf32>
      %46 = arith.mulf %43, %45 : vector<8x128xf32>
      %c0_28 = arith.constant 0 : index
      %c0_29 = arith.constant 0 : index
      %47 = vector.load %arg4[%c0_28, %c0_29] : memref<1x128xf32, #tpu.memory_space<vmem>>, vector<1x128xf32>
      %48 = vector.broadcast %47 : vector<1x128xf32> to vector<8x128xf32>
      %49 = arith.addf %46, %48 : vector<8x128xf32>
      %50 = arith.index_cast %3 : i32 to index
      %c0_30 = arith.constant 0 : index
      %c0_31 = arith.constant 0 : index
      %51 = vector.load %arg6[%50, %c0_30, %c0_31] : memref<2x8x128xf32, #tpu.memory_space<vmem>>, vector<1x8x128xf32>
      %52 = vector.shape_cast %51 : vector<1x8x128xf32> to vector<8x128xf32>
      %53 = vector.shape_cast %49 : vector<8x128xf32> to vector<1x8x128xf32>
      tpu.vector_store %arg6[%50, %c0_30, %c0_31], %53 {strides = array<i32>} : memref<2x8x128xf32, #tpu.memory_space<vmem>>, vector<1x8x128xf32>,
    }
    %c2_i32_3 = arith.constant 2 : i32
    return
  }
  func.func @transform_0(%arg0: i32, %arg1: memref<2x8xi32, #tpu.memory_space<smem>>) -> (i32, i32) {
    %c0_i32 = arith.constant 0 : i32
    %c0_i32_0 = arith.constant 0 : i32
    %c0_i32_1 = arith.constant 0 : i32
    return %c0_i32, %c0_i32_0 : i32, i32
  }
  func.func @transform_1(%arg0: i32, %arg1: memref<2x8xi32, #tpu.memory_space<smem>>) -> (i32, i32) {
    %c0_i32 = arith.constant 0 : i32
    %c0_i32_0 = arith.constant 0 : i32
    %c0_i32_1 = arith.constant 0 : i32
    return %c0_i32, %c0_i32_0 : i32, i32
  }
  func.func @transform_2(%arg0: i32, %arg1: memref<2x8xi32, #tpu.memory_space<smem>>) -> (i32, i32) {
    %c0_i32 = arith.constant 0 : i32
    %c0_i32_0 = arith.constant 0 : i32
    %c0_i32_1 = arith.constant 0 : i32
    return %c0_i32, %c0_i32_0 : i32, i32
  }
  func.func @transform_4(%arg0: i32, %arg1: memref<2x8xi32, #tpu.memory_space<smem>>) -> (i32, i32, i32) {
    %c0_i32 = arith.constant 0 : i32
    %c0_i32_0 = arith.constant 0 : i32
    %c0_i32_1 = arith.constant 0 : i32
    return %arg0, %c0_i32, %c0_i32_0 : i32, i32, i32
  }
}

</mosaic_0001>

<llo_original>
// kernel: tpu_custom_call.1
$region0: #{tpu_custom_call.1}
  #allocation0 [shape = 'u32[]', space=smem, size = 0x4, offset = 0x4, fixed_abs, tag = 'smem constant byte address 0x4 - core index']
  #allocation1 [shape = 'u32[144,128]{1,0:T(1,128)}', space=vmem, size = 0x12000, scoped, tag = 'internal scratch']
  #allocation2 [shape = 'f32[2,8,128]{2,1,0:T(8,128)}', space=vmem, size = 0x2000, scoped, tag = 'scratch operand']
  #allocation3 [shape = 's32[2]{0}', space=sflag, size = 0x8, scoped, tag = 'scratch operand']
  #allocation4 [shape = 's32[1]{0}', space=sflag, size = 0x4, scoped, tag = 'scoped memory for tpu_custom_call.1']
  #allocation5 [shape = 'u8[1024]{0}', space=smem, size = 0x400, scoped, tag = 'prefetched SMEM operand 0']
  #allocation10 [shape = 's32[]', space=sflag, size = 0x4, offset = 0, fixed_abs, tag = 'sflag constant byte address 0x0 - dummy sync flag']
  #allocation11 [shape = 's32[]', space=sflag, size = 0x4, offset = 0, fixed_abs, tag = 'sflag constant byte address 0x0 - dummy sync flag']
  #allocation12 [shape = 'u32[]', space=smem, size = 0x4, offset = 0x44, fixed_abs, tag = 'smem constant byte address 0x44 - assertion arg 0']
  #allocation13 [shape = 'u32[]', space=smem, size = 0x4, offset = 0x48, fixed_abs, tag = 'smem constant byte address 0x48 - assertion arg 1']
  #allocation14 [shape = 's32[]', space=sflag, size = 0x4, offset = 0, fixed_abs, tag = 'sflag constant byte address 0x0 - dummy sync flag']
  #allocation15 [shape = 's32[]', space=sflag, size = 0x4, offset = 0, fixed_abs, tag = 'sflag constant byte address 0x0 - dummy sync flag']
  %s0 = inlined_call_operand.hbm [shape: s32[2,8], index: 0, kind: input, shape index: {}]
  %s1 = inlined_call_operand.hbm [shape: f32[8,128], index: 1, kind: input, shape index: {}]
  %s2 = inlined_call_operand.vmem [shape: f32[1,128], index: 2, kind: input, shape index: {}]
  %s3 = inlined_call_operand.vmem [shape: f32[1,128], index: 3, kind: input, shape index: {}]
  %s4 = inlined_call_operand.hbm [shape: f32[64,128], index: 4, kind: input, shape index: {}]
  %s5 = inlined_call_operand.hbm [shape: f32[2,8,128], index: 5, kind: output, shape index: {}]
  %s6 = sld [smem:[#allocation0]]
  $region66: #{tpu_custom_call.1} parent=0
    _
  %s8 = ssub.s32 1, %s6
  %s9 = scalar_select 0, %s8, %s6
  %11 = dma.hbm_to_smem %s0, 32, [#allocation5], [#allocation4]
  %12 = dma.done [#allocation4], 32
  %13 = sfence
  $region1: #{tpu_custom_call.1} parent=0
    #allocation6 [shape = 'u8[4096]{0}', space=vmem, size = 0x1000, scoped, tag = 'input window, operand 1, single buffered']
    #allocation7 [shape = 's32[1]{0}', space=sflag, size = 0x4, scoped, tag = 'scoped memory for tpu_custom_call.1']
    #allocation8 [shape = 's32[1]{0}', space=sflag, size = 0x4, scoped, tag = 'scoped memory for tpu_custom_call.1']
    #allocation9 [shape = 'u8[8192]{0}', space=vmem, size = 0x2000, scoped, tag = 'output window, operand 0, single buffered']
    %14 = vsyncpa [#allocation7], 0
    %15 = vsyncpa [#allocation8], 0
    // Predicated region
    $region2: #{tpu_custom_call.1} parent=1 // pred_check
      _
    $region3: #{tpu_custom_call.1} parent=1 // pred_check_branch
      %17 = sbr.rel (0) target = $region5
    $region4: #{tpu_custom_call.1} parent=1 // pred_region
      %s19 = ssub.s32 128, 128
      %20 = vsyncadd [#allocation7], %s19
      %s22 = sshll.u32 [#allocation6], 4
      %s23 = int_to_ptr.vmem [resolvable:$true] %s22
      %25 = dma.hbm_to_vmem [thread:$0]  %s1, 128, %s23, [#allocation7]
    $region5: #{tpu_custom_call.1} parent=1 // pred_fallthru
      _
    // Predicated region
    $region6: #{tpu_custom_call.1} parent=1 // pred_check
      _
    $region7: #{tpu_custom_call.1} parent=1 // pred_check_branch
      %27 = sbr.rel (0) target = $region9
    $region8: #{tpu_custom_call.1} parent=1 // pred_region
      _
    $region9: #{tpu_custom_call.1} parent=1 // pred_fallthru
      _
    // Predicated region
    $region10: #{tpu_custom_call.1} parent=1 // pred_check
      _
    $region11: #{tpu_custom_call.1} parent=1 // pred_check_branch
      %29 = sbr.rel (0) target = $region13
    $region12: #{tpu_custom_call.1} parent=1 // pred_region
      _
    $region13: #{tpu_custom_call.1} parent=1 // pred_fallthru
      _
    // Predicated region
    $region14: #{tpu_custom_call.1} parent=1 // pred_check
      _
    $region15: #{tpu_custom_call.1} parent=1 // pred_check_branch
      %31 = sbr.rel (0) target = $region17
    $region16: #{tpu_custom_call.1} parent=1 // pred_region
      %32 = dma.done [#allocation7], 128
    $region17: #{tpu_custom_call.1} parent=1 // pred_fallthru
      _
    loop: start=0, step=1, limit=8
    $region18: #{tpu_custom_call.1} parent=1 // loop_pre_header
      _
    $region19: #{tpu_custom_call.1} parent=1 // loop_header
      %s34 = sphi 0, %s38
      %p35 = scmp.ge.s32.totalorder %s34, 8
    $region20: #{tpu_custom_call.1} parent=1 // loop_header_branch
      %37 = sbr.rel (%p35) target = $region24
    $region21: #{tpu_custom_call.1} parent=1 // loop_body
      %s39 = smul.u32 0, 2
      %s40 = sshra.s32 %s34, 7
      %s41 = sand.u32 %s34, 127
      %s42 = sadd.s32 %s40, %s39
      %s43 = smul.u32 %s42, 128
      %s44 = sshra.s32 %s34, 7
      %s45 = sand.u32 %s34, 127
      %s46 = sadd.s32 %s43, %s45
      %s47 = sld [smem:[#allocation5 + %s46]]
      %s48 = smul.addr %s47, 16
      %s49 = scalar_lea.hbm %s4, %s48
      %s50 = scalar_lea.vmem [#allocation2], %s34
      // Predicated region
      $region25: #{tpu_custom_call.1} parent=21 // pred_check
        _
      $region26: #{tpu_custom_call.1} parent=21 // pred_check_branch
        %52 = sbr.rel target = $region28
      $region27: #{tpu_custom_call.1} parent=21 // pred_region
        %53 = sst [smem:[#allocation12]] [#allocation11]
        %54 = sst [smem:[#allocation13]] [#allocation10]
      $region28: #{tpu_custom_call.1} parent=21 // pred_fallthru
        _
      %56 = shalt.err (0)
      %s58 = sshll.u32 %s50, 4
      %s59 = int_to_ptr.vmem [resolvable:$true] %s58
      %61 = dma.hbm_to_vmem [thread:$0]  %s49, 16, %s59, [#allocation3]
    $region22: #{tpu_custom_call.1} parent=1 // loop_footer
      %s38 = sadd.s32 1, %s34
    $region23: #{tpu_custom_call.1} parent=1 // loop_footer_branch
      %33 = sbr.rel target = $region19
    $region24: #{tpu_custom_call.1} parent=1 // loop_exit
      _
    loop: start=0, step=1, limit=2
    $region29: #{tpu_custom_call.1} parent=1 // loop_pre_header
      _
    $region30: #{tpu_custom_call.1} parent=1 // loop_header
      %s63 = sphi 0, %s67
      %p64 = scmp.ge.s32.totalorder %s63, 2
    $region31: #{tpu_custom_call.1} parent=1 // loop_header_branch
      %66 = sbr.rel (%p64) target = $region35
    $region32: #{tpu_custom_call.1} parent=1 // loop_body
      %p68 = scmp.lt.s32.totalorder %s63, 0
      %s69 = ssub.s32 0, %s63
      %s70 = scalar_select %p68, %s69, %s63
      %s71 = sand.u32 %s70, 1
      %s72 = ssub.s32 0, %s71
      %s73 = scalar_select %p68, %s72, %s71
      %p74 = scmp.ne.s32.totalorder %s73, 0
      %p75 = scmp.lt.s32.totalorder %s73, 0
      %p76 = pnand %p75, %p74
      %p77 = pneg %p76
      %s78 = sadd.s32 %s73, 2
      %s79 = scalar_select %p77, %s78, %s73
      loop: start=0, step=1, limit=8
      $region36: #{tpu_custom_call.1} parent=32 // loop_pre_header
        _
      $region37: #{tpu_custom_call.1} parent=32 // loop_header
        %s81 = sphi 0, %s85
        %p82 = scmp.ge.s32.totalorder %s81, 8
      $region38: #{tpu_custom_call.1} parent=32 // loop_header_branch
        %84 = sbr.rel (%p82) target = $region42
      $region39: #{tpu_custom_call.1} parent=32 // loop_body
        %s86 = scalar_lea.sflag [#allocation3], %s79
        %88 = dma.done %s86, 16
      $region40: #{tpu_custom_call.1} parent=32 // loop_footer
        %s85 = sadd.s32 1, %s81
      $region41: #{tpu_custom_call.1} parent=32 // loop_footer_branch
        %80 = sbr.rel target = $region37
      $region42: #{tpu_custom_call.1} parent=32 // loop_exit
        _
      %s89 = sadd.s32 %s63, 1
      %p90 = scmp.lt.s32.totalorder %s89, 2
      // Predicated region
      $region43: #{tpu_custom_call.1} parent=32 // pred_check
        %p91 = pneg %p90
      $region44: #{tpu_custom_call.1} parent=32 // pred_check_branch
        %93 = sbr.rel (%p91) target = $region46
      $region45: #{tpu_custom_call.1} parent=32 // pred_region
        %s94 = ssub.s32 1, %s79
        loop: start=0, step=1, limit=8
        $region47: #{tpu_custom_call.1} parent=45 // loop_pre_header
          _
        $region48: #{tpu_custom_call.1} parent=45 // loop_header
          %s96 = sphi 0, %s100
          %p97 = scmp.ge.s32.totalorder %s96, 8
        $region49: #{tpu_custom_call.1} parent=45 // loop_header_branch
          %99 = sbr.rel (%p97) target = $region53
        $region50: #{tpu_custom_call.1} parent=45 // loop_body
          %s101 = smul.u32 0, 2
          %s102 = sadd.s32 %s101, %s89
          %s103 = sshra.s32 %s96, 7
          %s104 = sand.u32 %s96, 127
          %s105 = sadd.s32 %s103, %s102
          %s106 = smul.u32 %s105, 128
          %s107 = sshra.s32 %s96, 7
          %s108 = sand.u32 %s96, 127
          %s109 = sadd.s32 %s106, %s108
          %s110 = sld [smem:[#allocation5 + %s109]]
          %s111 = smul.addr %s110, 16
          %s112 = scalar_lea.hbm %s4, %s111
          %s113 = smul.u32 %s94, 8
          %s114 = sadd.s32 %s96, %s113
          %s115 = scalar_lea.vmem [#allocation2], %s114
          %s116 = scalar_lea.sflag [#allocation3], %s94
          // Predicated region
          $region54: #{tpu_custom_call.1} parent=50 // pred_check
            _
          $region55: #{tpu_custom_call.1} parent=50 // pred_check_branch
            %118 = sbr.rel target = $region57
          $region56: #{tpu_custom_call.1} parent=50 // pred_region
            %119 = sst [smem:[#allocation12]] [#allocation15]
            %120 = sst [smem:[#allocation13]] [#allocation14]
          $region57: #{tpu_custom_call.1} parent=50 // pred_fallthru
            _
          %122 = shalt.err (0)
          %s124 = sshll.u32 %s115, 4
          %s125 = int_to_ptr.vmem [resolvable:$true] %s124
          %127 = dma.hbm_to_vmem [thread:$0]  %s112, 16, %s125, %s116
        $region51: #{tpu_custom_call.1} parent=45 // loop_footer
          %s100 = sadd.s32 1, %s96
        $region52: #{tpu_custom_call.1} parent=45 // loop_footer_branch
          %95 = sbr.rel target = $region48
        $region53: #{tpu_custom_call.1} parent=45 // loop_exit
          _
      $region46: #{tpu_custom_call.1} parent=32 // pred_fallthru
        _
      %s128 = smul.u32 %s79, 8
      %s129 = scalar_lea.vmem [#allocation2], %s128
      %v130 = vld [vmem:[%s129] sm:$0xff]
      %v131 = vld [vmem:[#allocation6] sm:$0xff]
      %v132 = vadd.f32 %v130, %v131
      %133 = vadd.xlane.f32.xlu0 %v132
      %v134 = vpop.xlane.xlu0 %133
      %v135 = vrcp.pop 128.0
      %v136 = vmul.f32 %v134, %v135
      %v137 = vmul.f32 %v132, %v132
      %138 = vadd.xlane.f32.xlu0 %v137
      %v139 = vpop.xlane.xlu0 %138
      %v140 = vmul.f32 %v139, %v135
      %v141 = vmul.f32 %v136, %v136
      %v142 = vsub.f32 %v140, %v141
      %v143 = vmax.f32 %v142, 0.0
      %v144 = vsub.f32 %v132, %v136
      %v145 = vadd.f32 %v143, 1e-12
      %v146 = vrsqrt.pop %v145
      %v147 = vmul.f32 %v144, %v146
      %v148 = vld [vmem:[%s2] sm:$0x1]
      %v150 = vlaneseq
      %v151 = vshrl.u32 %v150, 7
      %v152 = vsub.s32 0, %v151
      %v153 = vrot.slane %v148, %v152
      %v155 = vmul.f32 %v147, %v153
      %v156 = vld [vmem:[%s3] sm:$0x1]
      %v158 = vlaneseq
      %v159 = vshrl.u32 %v158, 7
      %v160 = vsub.s32 0, %v159
      %v161 = vrot.slane %v156, %v160
      %v163 = vadd.f32 %v155, %v161
      %s164 = smul.u32 %s63, 8
      %s165 = scalar_lea.vmem [#allocation9], %s164
      %166 = vst [vmem:[%s165] sm:$0xff] %v163
    $region33: #{tpu_custom_call.1} parent=1 // loop_footer
      %s67 = sadd.s32 1, %s63
    $region34: #{tpu_custom_call.1} parent=1 // loop_footer_branch
      %62 = sbr.rel target = $region30
    $region35: #{tpu_custom_call.1} parent=1 // loop_exit
      _
    // Predicated region
    $region58: #{tpu_custom_call.1} parent=1 // pred_check
      _
    $region59: #{tpu_custom_call.1} parent=1 // pred_check_branch
      %168 = sbr.rel (0) target = $region61
    $region60: #{tpu_custom_call.1} parent=1 // pred_region
      %s170 = ssub.s32 256, 256
      %171 = vsyncadd [#allocation8], %s170
      %s172 = sshll.u32 [#allocation9], 4
      %s173 = int_to_ptr.vmem [resolvable:$true] %s172
      %178 = dma.vmem_to_hbm [thread:$0]  %s173, 256, %s5, [#allocation8], 128, 128, 8
    $region61: #{tpu_custom_call.1} parent=1 // pred_fallthru
      _
    // Predicated region
    $region62: #{tpu_custom_call.1} parent=1 // pred_check
      _
    $region63: #{tpu_custom_call.1} parent=1 // pred_check_branch
      %180 = sbr.rel (0) target = $region65
    $region64: #{tpu_custom_call.1} parent=1 // pred_region
      %181 = dma.done [#allocation8], 256
    $region65: #{tpu_custom_call.1} parent=1 // pred_fallthru
      _
    %182 = vsyncpa [#allocation7], 1
    %183 = vsyncpa [#allocation8], 1
  %184 = vsyncmov [#allocation3]
  %s185 = vpop.sfrf %184
  %p186 = scmp.eq.s32.totalorder %s185, 0
  %p187 = pneg %p186
  %189 = shalt.err (%p187)
  %s190 = scalar_lea.sflag [#allocation3], 1
  %191 = vsyncmov %s190
  %s192 = vpop.sfrf %191
  %p193 = scmp.eq.s32.totalorder %s192, 0
  %p194 = pneg %p193
  %196 = shalt.err (%p194)

</llo_original>
